<compile_context>
chip_gen: v5e
topology: v5e:2x2
jax: 0.10.0
libtpu: 0.0.40
codegen_flags: <defaults>
</compile_context>

<pallas_src>
import jax
import jax.numpy as jnp
from jax import lax
from jax.experimental import pallas as pl
from jax.experimental.pallas import tpu as pltpu  # noqa: F401  (TPU backend)

# ---- model config (small, consistent with the module) ----
BATCH = 2
SEQ = 8
HIDDEN = 32
N_HEADS = 4
N_KV_HEADS = 2
HEAD_DIM = HIDDEN // N_HEADS            # 8
N_REP = N_HEADS // N_KV_HEADS           # 2
INTERMEDIATE = 64
RMS_EPS = 1e-5
ROPE_BASE = 10000.0
START_POS = 0
TOKENS = BATCH * SEQ                    # 16

NEG_INF = -1e30


def _rmsnorm(v, w, eps):
    # v: (T, H) f32, w: (1, H) f32
    var = jnp.mean(v * v, axis=-1, keepdims=True)
    return v * lax.rsqrt(var + eps) * w


# --------------------------------------------------------------------------
# Kernel
# --------------------------------------------------------------------------
def llama_block_kernel(
    x_ref,      # (T, H)         f32
    wq_ref,     # (NH, H, hd)    bf16
    wqr_ref,    # (NH, H, hd)    bf16   (Wq @ rotate_half matrix)
    wk_ref,     # (NKV, H, hd)   bf16
    wkr_ref,    # (NKV, H, hd)   bf16   (Wk @ rotate_half matrix)
    wv_ref,     # (NKV, H, hd)   bf16
    wo_ref,     # (NH, hd, H)    bf16
    wg_ref,     # (H, I)         bf16
    wu_ref,     # (H, I)         bf16
    wd_ref,     # (I, H)         bf16
    ln1_ref,    # (1, H)         f32
    ln2_ref,    # (1, H)         f32
    cos_ref,    # (T, hd)        f32
    sin_ref,    # (T, hd)        f32
    mask_ref,   # (T, T)         f32   block-causal additive mask (0 / -1e30)
    o_ref,      # (T, H)         f32
):
    f32 = jnp.float32
    bf16 = jnp.bfloat16
    tokens, hidden = x_ref.shape

    x = x_ref[...]                          # (T, H) f32
    cos = cos_ref[...][None]                # (1, T, hd)
    sin = sin_ref[...][None]

    # ---------------- attention branch ----------------
    xn = _rmsnorm(x, ln1_ref[...], RMS_EPS)
    xn_b = xn.astype(bf16)
    xq_in = jnp.broadcast_to(xn_b, (N_HEADS, tokens, hidden))       # leading-batch
    xkv_in = jnp.broadcast_to(xn_b, (N_KV_HEADS, tokens, hidden))

    # Per-head projections as leading-batch bf16 matmuls with f32 accumulation.
    q = jnp.einsum("htd,hdk->htk", xq_in, wq_ref[...], preferred_element_type=f32)
    q_rot = jnp.einsum("htd,hdk->htk", xq_in, wqr_ref[...], preferred_element_type=f32)
    k = jnp.einsum("htd,hdk->htk", xkv_in, wk_ref[...], preferred_element_type=f32)
    k_rot = jnp.einsum("htd,hdk->htk", xkv_in, wkr_ref[...], preferred_element_type=f32)
    v = jnp.einsum("htd,hdk->htk", xkv_in, wv_ref[...], preferred_element_type=f32)

    # RoPE, applied once to all Q heads and once to all KV heads.
    # rotate_half is already folded into the *_rot projections (host-side).
    q = q * cos + q_rot * sin               # (NH, T, hd)  f32
    k = k * cos + k_rot * sin               # (NKV, T, hd) f32

    # GQA: expand KV heads along the leading (slab) dim only -> no lane movement.
    k = jnp.broadcast_to(
        k[:, None], (N_KV_HEADS, N_REP, tokens, HEAD_DIM)
    ).reshape(N_HEADS, tokens, HEAD_DIM)
    v = jnp.broadcast_to(
        v[:, None], (N_KV_HEADS, N_REP, tokens, HEAD_DIM)
    ).reshape(N_HEADS, tokens, HEAD_DIM)

    scale = 1.0 / (HEAD_DIM ** 0.5)
    s = jnp.einsum("hqd,hkd->hqk", q.astype(bf16), k.astype(bf16),
                   preferred_element_type=f32) * scale              # (NH, T, T)
    s = s + mask_ref[...][None]             # block-causal mask (f32)

    m = jnp.max(s, axis=-1, keepdims=True)
    e = jnp.exp(s - m)
    p = e * pl.reciprocal(jnp.sum(e, axis=-1, keepdims=True), approx=True)

    ctx = jnp.einsum("hqk,hkd->hqd", p.astype(bf16), v.astype(bf16),
                     preferred_element_type=f32)                    # (NH, T, hd)

    # Output projection: batched per-head matmul on the MXU, then reduce the
    # head (leading/slab) dim with cheap VPU adds.
    attn = jnp.einsum("htd,hdk->htk", ctx.astype(bf16), wo_ref[...],
                      preferred_element_type=f32).sum(axis=0)       # (T, H)

    h1 = x + attn
    # Clamp(enable=use_clamp) is the identity for the default use_clamp=False.

    # ---------------- MLP branch (SwiGLU) ----------------
    hn = _rmsnorm(h1, ln2_ref[...], RMS_EPS)
    hn_b = hn.astype(bf16)
    gate = jnp.dot(hn_b, wg_ref[...], preferred_element_type=f32)   # (T, I)
    up = jnp.dot(hn_b, wu_ref[...], preferred_element_type=f32)     # (T, I)
    silu = gate * pl.reciprocal(1.0 + jnp.exp(-gate), approx=True)
    mlp = jnp.dot((silu * up).astype(bf16), wd_ref[...],
                  preferred_element_type=f32)                       # (T, H)

    o_ref[...] = h1 + mlp


# --------------------------------------------------------------------------
# Host-side preparation + pallas_call wrapper
# --------------------------------------------------------------------------
def _rotate_half_matrix(dim):
    # t @ R == rotate_half(t) == concat([-t[half:], t[:half]])
    half = dim // 2
    idx = jnp.arange(half)
    r = jnp.zeros((dim, dim), jnp.float32)
    r = r.at[idx, idx + half].set(1.0)     # out[j>=half] =  t[j-half]
    r = r.at[idx + half, idx].set(-1.0)    # out[j< half] = -t[j+half]
    return r


def llama_block_pallas(x, params, cos, sin):
    B, S, H = x.shape
    T = B * S
    hd = HEAD_DIM
    bf = jnp.bfloat16

    # ---- weight prep (layout only; in a real model this is done once) ----
    R = _rotate_half_matrix(hd)
    wq3 = params["wq"].reshape(H, N_HEADS, hd).transpose(1, 0, 2)       # (NH, H, hd)
    wk3 = params["wk"].reshape(H, N_KV_HEADS, hd).transpose(1, 0, 2)    # (NKV, H, hd)
    wv3 = params["wv"].reshape(H, N_KV_HEADS, hd).transpose(1, 0, 2)
    wq3r = wq3 @ R                                                      # rotate_half folded in
    wk3r = wk3 @ R
    wo3 = params["wo"].reshape(N_HEADS, hd, H)                          # (NH, hd, H)

    # ---- activations / tables ----
    x2 = x.reshape(T, H)
    cos_f = jnp.tile(cos, (B, 1))          # row b*S+s -> position s
    sin_f = jnp.tile(sin, (B, 1))

    r = jnp.arange(T)
    same_batch = (r[:, None] // S) == (r[None, :] // S)
    causal = r[None, :] <= r[:, None]
    mask = jnp.where(same_batch & causal, 0.0, NEG_INF).astype(jnp.float32)

    out2 = pl.pallas_call(
        llama_block_kernel,
        out_shape=jax.ShapeDtypeStruct((T, H), jnp.float32),
        # No grid: the whole (tiny) problem is one block; all operands are
        # whole-array VMEM refs (no per-step pipeline overhead, no
        # double-buffered weight copies).
    )(
        x2,
        wq3.astype(bf), wq3r.astype(bf),
        wk3.astype(bf), wk3r.astype(bf),
        wv3.astype(bf), wo3.astype(bf),
        params["wg"].astype(bf), params["wu"].astype(bf), params["wd"].astype(bf),
        params["w_ln1"], params["w_ln2"],
        cos_f, sin_f, mask,
    )
    return out2.reshape(B, S, H)


# --------------------------------------------------------------------------
# Pure-JAX f32 reference (mirrors the PyTorch module)
# --------------------------------------------------------------------------
def llama_block_ref(x, params, cos, sin):
    def rmsnorm(v, w):
        var = jnp.mean(v * v, axis=-1, keepdims=True)
        return v * lax.rsqrt(var + RMS_EPS) * w

    def rope(t):  # (B, S, nh, hd)
        half = t.shape[-1] // 2
        rot = jnp.concatenate([-t[..., half:], t[..., :half]], axis=-1)
        return t * cos[None, :, None, :] + rot * sin[None, :, None, :]

    B, S, H = x.shape
    xn = rmsnorm(x, params["w_ln1"][0])
    q = (xn @ params["wq"]).reshape(B, S, N_HEADS, HEAD_DIM)
    k = (xn @ params["wk"]).reshape(B, S, N_KV_HEADS, HEAD_DIM)
    v = (xn @ params["wv"]).reshape(B, S, N_KV_HEADS, HEAD_DIM)
    q, k = rope(q), rope(k)
    k = jnp.repeat(k, N_REP, axis=2)
    v = jnp.repeat(v, N_REP, axis=2)
    q = q.transpose(0, 2, 1, 3)
    k = k.transpose(0, 2, 1, 3)
    v = v.transpose(0, 2, 1, 3)
    s = jnp.einsum("bhqd,bhkd->bhqk", q, k) / (HEAD_DIM ** 0.5)
    row = jnp.arange(S)[:, None]
    col = jnp.arange(S)[None, :]
    s = jnp.where(col <= row, s, NEG_INF)
    p = jax.nn.softmax(s, axis=-1)
    o = jnp.einsum("bhqk,bhkd->bhqd", p, v).transpose(0, 2, 1, 3).reshape(B, S, H)
    h1 = x + o @ params["wo"]
    hn = rmsnorm(h1, params["w_ln2"][0])
    gate = hn @ params["wg"]
    up = hn @ params["wu"]
    return h1 + (jax.nn.silu(gate) * up) @ params["wd"]


def make_params(key):
    ks = jax.random.split(key, 8)
    scale = 0.05
    return {
        "wq": jax.random.normal(ks[0], (HIDDEN, N_HEADS * HEAD_DIM), jnp.float32) * scale,
        "wk": jax.random.normal(ks[1], (HIDDEN, N_KV_HEADS * HEAD_DIM), jnp.float32) * scale,
        "wv": jax.random.normal(ks[2], (HIDDEN, N_KV_HEADS * HEAD_DIM), jnp.float32) * scale,
        "wo": jax.random.normal(ks[3], (N_HEADS * HEAD_DIM, HIDDEN), jnp.float32) * scale,
        "wg": jax.random.normal(ks[4], (HIDDEN, INTERMEDIATE), jnp.float32) * scale,
        "wu": jax.random.normal(ks[5], (HIDDEN, INTERMEDIATE), jnp.float32) * scale,
        "wd": jax.random.normal(ks[6], (INTERMEDIATE, HIDDEN), jnp.float32) * scale,
        "w_ln1": jnp.ones((1, HIDDEN), jnp.float32),
        "w_ln2": jnp.ones((1, HIDDEN), jnp.float32),
    }


def make_rope_tables(seq_len, start_pos):
    inv_freq = 1.0 / (ROPE_BASE ** (jnp.arange(0, HEAD_DIM, 2, dtype=jnp.float32) / HEAD_DIM))
    pos = jnp.arange(start_pos, start_pos + seq_len, dtype=jnp.float32)
    freqs = pos[:, None] * inv_freq[None, :]              # (S, hd/2)
    emb = jnp.concatenate([freqs, freqs], axis=-1)        # (S, hd)
    return jnp.cos(emb), jnp.sin(emb)


if __name__ == "__main__":
    key = jax.random.PRNGKey(0)
    k_x, k_p = jax.random.split(key)
    x = jax.random.normal(k_x, (BATCH, SEQ, HIDDEN), jnp.float32)
    params = make_params(k_p)
    cos, sin = make_rope_tables(SEQ, START_POS)

    out = llama_block_pallas(x, params, cos, sin)
    out = jax.block_until_ready(out)

    ref = llama_block_ref(x, params, cos, sin)
    assert out.shape == (BATCH, SEQ, HIDDEN)
    # Tolerance accounts for bf16 MXU operands (f32 accumulation) and
    # pl.reciprocal(approx=True) in softmax / SiLU; reference is pure f32.
    err = float(jnp.max(jnp.abs(out - ref)))
    assert jnp.allclose(out, ref, atol=2e-2, rtol=2e-2), f"max abs diff {err}"

    print("KERNEL_OK")
</pallas_src>

<mosaic_0001>
module attributes {stable_mosaic.version = 11 : i64} {
  func.func @llama_block_kernel(%arg0: memref<16x32xf32, #tpu.memory_space<vmem>>, %arg1: memref<4x32x8xbf16, #tpu.memory_space<vmem>>, %arg2: memref<4x32x8xbf16, #tpu.memory_space<vmem>>, %arg3: memref<2x32x8xbf16, #tpu.memory_space<vmem>>, %arg4: memref<2x32x8xbf16, #tpu.memory_space<vmem>>, %arg5: memref<2x32x8xbf16, #tpu.memory_space<vmem>>, %arg6: memref<4x8x32xbf16, #tpu.memory_space<vmem>>, %arg7: memref<32x64xbf16, #tpu.memory_space<vmem>>, %arg8: memref<32x64xbf16, #tpu.memory_space<vmem>>, %arg9: memref<64x32xbf16, #tpu.memory_space<vmem>>, %arg10: memref<1x32xf32, #tpu.memory_space<vmem>>, %arg11: memref<1x32xf32, #tpu.memory_space<vmem>>, %arg12: memref<16x8xf32, #tpu.memory_space<vmem>>, %arg13: memref<16x8xf32, #tpu.memory_space<vmem>>, %arg14: memref<16x16xf32, #tpu.memory_space<vmem>>, %arg15: memref<16x32xf32, #tpu.memory_space<vmem>>) attributes {dimension_semantics = [], scalar_prefetch = 0 : i64, scratch_operands = 0 : i64, tpu.core_type = #tpu.core_type<tc>} {
    %c0 = arith.constant 0 : index
    %c0_0 = arith.constant 0 : index
    %0 = vector.load %arg0[%c0, %c0_0] : memref<16x32xf32, #tpu.memory_space<vmem>>, vector<16x32xf32>
    %c0_1 = arith.constant 0 : index
    %c0_2 = arith.constant 0 : index
    %1 = vector.load %arg12[%c0_1, %c0_2] : memref<16x8xf32, #tpu.memory_space<vmem>>, vector<16x8xf32>
    %2 = vector.shape_cast %1 : vector<16x8xf32> to vector<1x16x8xf32>
    %c0_3 = arith.constant 0 : index
    %c0_4 = arith.constant 0 : index
    %3 = vector.load %arg13[%c0_3, %c0_4] : memref<16x8xf32, #tpu.memory_space<vmem>>, vector<16x8xf32>
    %4 = vector.shape_cast %3 : vector<16x8xf32> to vector<1x16x8xf32>
    %c0_5 = arith.constant 0 : index
    %c0_6 = arith.constant 0 : index
    %5 = vector.load %arg10[%c0_5, %c0_6] : memref<1x32xf32, #tpu.memory_space<vmem>>, vector<1x32xf32>
    %6 = arith.mulf %0, %0 : vector<16x32xf32>
    %cst = arith.constant dense<0.000000e+00> : vector<16xf32>
    %7 = vector.multi_reduction <add>, %6, %cst [1] : vector<16x32xf32> to vector<16xf32>
    %8 = vector.shape_cast %7 : vector<16xf32> to vector<16x1xf32>
    %cst_7 = arith.constant 3.200000e+01 : f32
    %9 = vector.broadcast %cst_7 : f32 to vector<16x1xf32>
    %10 = arith.divf %8, %9 : vector<16x1xf32>
    %cst_8 = arith.constant 9.99999974E-6 : f32
    %11 = vector.broadcast %cst_8 : f32 to vector<16x1xf32>
    %12 = arith.addf %10, %11 : vector<16x1xf32>
    %13 = math.rsqrt %12 : vector<16x1xf32>
    %14 = vector.broadcast %13 : vector<16x1xf32> to vector<16x32xf32>
    %15 = arith.mulf %0, %14 : vector<16x32xf32>
    %16 = vector.broadcast %5 : vector<1x32xf32> to vector<16x32xf32>
    %17 = arith.mulf %15, %16 : vector<16x32xf32>
    %18 = arith.truncf %17 : vector<16x32xf32> to vector<16x32xbf16>
    %19 = vector.shape_cast %18 : vector<16x32xbf16> to vector<1x16x32xbf16>
    %20 = vector.broadcast %19 : vector<1x16x32xbf16> to vector<4x16x32xbf16>
    %21 = vector.shape_cast %18 : vector<16x32xbf16> to vector<1x16x32xbf16>
    %22 = vector.broadcast %21 : vector<1x16x32xbf16> to vector<2x16x32xbf16>
    %c0_9 = arith.constant 0 : index
    %c0_10 = arith.constant 0 : index
    %c0_11 = arith.constant 0 : index
    %23 = vector.load %arg1[%c0_9, %c0_10, %c0_11] : memref<4x32x8xbf16, #tpu.memory_space<vmem>>, vector<4x32x8xbf16>
    "tpu.trace_start"() <{level = 10 : i32, message = "htd,hdk->htk"}> : () -> ()
    %cst_12 = arith.constant dense<0.000000e+00> : vector<4x16x8xf32>
    %24 = tpu.matmul %20, %23, %cst_12 {dimension_numbers = #tpu.dot_dimension_numbers<[2], [1], [1], [2], [0, 0, 0, 1, 1, 2], [0], [0]>} : vector<4x16x32xbf16>, vector<4x32x8xbf16>, vector<4x16x8xf32> -> vector<4x16x8xf32>
    "tpu.trace_stop"() : () -> ()
    %c0_13 = arith.constant 0 : index
    %c0_14 = arith.constant 0 : index
    %c0_15 = arith.constant 0 : index
    %25 = vector.load %arg2[%c0_13, %c0_14, %c0_15] : memref<4x32x8xbf16, #tpu.memory_space<vmem>>, vector<4x32x8xbf16>
    "tpu.trace_start"() <{level = 10 : i32, message = "htd,hdk->htk"}> : () -> ()
    %cst_16 = arith.constant dense<0.000000e+00> : vector<4x16x8xf32>
    %26 = tpu.matmul %20, %25, %cst_16 {dimension_numbers = #tpu.dot_dimension_numbers<[2], [1], [1], [2], [0, 0, 0, 1, 1, 2], [0], [0]>} : vector<4x16x32xbf16>, vector<4x32x8xbf16>, vector<4x16x8xf32> -> vector<4x16x8xf32>
    "tpu.trace_stop"() : () -> ()
    %c0_17 = arith.constant 0 : index
    %c0_18 = arith.constant 0 : index
    %c0_19 = arith.constant 0 : index
    %27 = vector.load %arg3[%c0_17, %c0_18, %c0_19] : memref<2x32x8xbf16, #tpu.memory_space<vmem>>, vector<2x32x8xbf16>
    "tpu.trace_start"() <{level = 10 : i32, message = "htd,hdk->htk"}> : () -> ()
    %cst_20 = arith.constant dense<0.000000e+00> : vector<2x16x8xf32>
    %28 = tpu.matmul %22, %27, %cst_20 {dimension_numbers = #tpu.dot_dimension_numbers<[2], [1], [1], [2], [0, 0, 0, 1, 1, 2], [0], [0]>} : vector<2x16x32xbf16>, vector<2x32x8xbf16>, vector<2x16x8xf32> -> vector<2x16x8xf32>
    "tpu.trace_stop"() : () -> ()
    %c0_21 = arith.constant 0 : index
    %c0_22 = arith.constant 0 : index
    %c0_23 = arith.constant 0 : index
    %29 = vector.load %arg4[%c0_21, %c0_22, %c0_23] : memref<2x32x8xbf16, #tpu.memory_space<vmem>>, vector<2x32x8xbf16>
    "tpu.trace_start"() <{level = 10 : i32, message = "htd,hdk->htk"}> : () -> ()
    %cst_24 = arith.constant dense<0.000000e+00> : vector<2x16x8xf32>
    %30 = tpu.matmul %22, %29, %cst_24 {dimension_numbers = #tpu.dot_dimension_numbers<[2], [1], [1], [2], [0, 0, 0, 1, 1, 2], [0], [0]>} : vector<2x16x32xbf16>, vector<2x32x8xbf16>, vector<2x16x8xf32> -> vector<2x16x8xf32>
    "tpu.trace_stop"() : () -> ()
    %c0_25 = arith.constant 0 : index
    %c0_26 = arith.constant 0 : index
    %c0_27 = arith.constant 0 : index
    %31 = vector.load %arg5[%c0_25, %c0_26, %c0_27] : memref<2x32x8xbf16, #tpu.memory_space<vmem>>, vector<2x32x8xbf16>
    "tpu.trace_start"() <{level = 10 : i32, message = "htd,hdk->htk"}> : () -> ()
    %cst_28 = arith.constant dense<0.000000e+00> : vector<2x16x8xf32>
    %32 = tpu.matmul %22, %31, %cst_28 {dimension_numbers = #tpu.dot_dimension_numbers<[2], [1], [1], [2], [0, 0, 0, 1, 1, 2], [0], [0]>} : vector<2x16x32xbf16>, vector<2x32x8xbf16>, vector<2x16x8xf32> -> vector<2x16x8xf32>
    "tpu.trace_stop"() : () -> ()
    %33 = vector.broadcast %2 : vector<1x16x8xf32> to vector<4x16x8xf32>
    %34 = arith.mulf %24, %33 : vector<4x16x8xf32>
    %35 = vector.broadcast %4 : vector<1x16x8xf32> to vector<4x16x8xf32>
    %36 = arith.mulf %26, %35 : vector<4x16x8xf32>
    %37 = arith.addf %34, %36 : vector<4x16x8xf32>
    %38 = vector.broadcast %2 : vector<1x16x8xf32> to vector<2x16x8xf32>
    %39 = arith.mulf %28, %38 : vector<2x16x8xf32>
    %40 = vector.broadcast %4 : vector<1x16x8xf32> to vector<2x16x8xf32>
    %41 = arith.mulf %30, %40 : vector<2x16x8xf32>
    %42 = arith.addf %39, %41 : vector<2x16x8xf32>
    %43 = vector.shape_cast %42 : vector<2x16x8xf32> to vector<2x1x16x8xf32>
    %44 = vector.shape_cast %43 : vector<2x1x16x8xf32> to vector<2x1x16x8xf32>
    %45 = vector.broadcast %44 : vector<2x1x16x8xf32> to vector<2x2x16x8xf32>
    %46 = vector.shape_cast %45 : vector<2x2x16x8xf32> to vector<4x16x8xf32>
    %47 = vector.shape_cast %32 : vector<2x16x8xf32> to vector<2x1x16x8xf32>
    %48 = vector.shape_cast %47 : vector<2x1x16x8xf32> to vector<2x1x16x8xf32>
    %49 = vector.broadcast %48 : vector<2x1x16x8xf32> to vector<2x2x16x8xf32>
    %50 = vector.shape_cast %49 : vector<2x2x16x8xf32> to vector<4x16x8xf32>
    %51 = arith.truncf %37 : vector<4x16x8xf32> to vector<4x16x8xbf16>
    %52 = arith.truncf %46 : vector<4x16x8xf32> to vector<4x16x8xbf16>
    "tpu.trace_start"() <{level = 10 : i32, message = "hqd,hkd->hqk"}> : () -> ()
    %cst_29 = arith.constant dense<0.000000e+00> : vector<4x16x16xf32>
    %53 = tpu.matmul %51, %52, %cst_29 {dimension_numbers = #tpu.dot_dimension_numbers<[2], [2], [1], [1], [0, 0, 0, 1, 1, 1], [0], [0]>} : vector<4x16x8xbf16>, vector<4x16x8xbf16>, vector<4x16x16xf32> -> vector<4x16x16xf32>
    "tpu.trace_stop"() : () -> ()
    %cst_30 = arith.constant 0.353553385 : f32
    %54 = vector.broadcast %cst_30 : f32 to vector<4x16x16xf32>
    %55 = arith.mulf %53, %54 : vector<4x16x16xf32>
    %c0_31 = arith.constant 0 : index
    %c0_32 = arith.constant 0 : index
    %56 = vector.load %arg14[%c0_31, %c0_32] : memref<16x16xf32, #tpu.memory_space<vmem>>, vector<16x16xf32>
    %57 = vector.shape_cast %56 : vector<16x16xf32> to vector<1x16x16xf32>
    %58 = vector.broadcast %57 : vector<1x16x16xf32> to vector<4x16x16xf32>
    %59 = arith.addf %55, %58 : vector<4x16x16xf32>
    %cst_33 = arith.constant dense<0xFF800000> : vector<4x16xf32>
    %60 = vector.multi_reduction <maximumf>, %59, %cst_33 [2] : vector<4x16x16xf32> to vector<4x16xf32>
    %61 = vector.shape_cast %60 : vector<4x16xf32> to vector<4x16x1xf32>
    %62 = vector.broadcast %61 : vector<4x16x1xf32> to vector<4x16x16xf32>
    %63 = arith.subf %59, %62 : vector<4x16x16xf32>
    %64 = math.exp %63 : vector<4x16x16xf32>
    %cst_34 = arith.constant dense<0.000000e+00> : vector<4x16xf32>
    %65 = vector.multi_reduction <add>, %64, %cst_34 [2] : vector<4x16x16xf32> to vector<4x16xf32>
    %66 = vector.shape_cast %65 : vector<4x16xf32> to vector<4x16x1xf32>
    %67 = tpu.reciprocal %66 {approx = true} : vector<4x16x1xf32> -> vector<4x16x1xf32>
    %68 = vector.broadcast %67 : vector<4x16x1xf32> to vector<4x16x16xf32>
    %69 = arith.mulf %64, %68 : vector<4x16x16xf32>
    %70 = arith.truncf %69 : vector<4x16x16xf32> to vector<4x16x16xbf16>
    %71 = arith.truncf %50 : vector<4x16x8xf32> to vector<4x16x8xbf16>
    "tpu.trace_start"() <{level = 10 : i32, message = "hqk,hkd->hqd"}> : () -> ()
    %cst_35 = arith.constant dense<0.000000e+00> : vector<4x16x8xf32>
    %72 = tpu.matmul %70, %71, %cst_35 {dimension_numbers = #tpu.dot_dimension_numbers<[2], [1], [1], [2], [0, 0, 0, 1, 1, 2], [0], [0]>} : vector<4x16x16xbf16>, vector<4x16x8xbf16>, vector<4x16x8xf32> -> vector<4x16x8xf32>
    "tpu.trace_stop"() : () -> ()
    %73 = arith.truncf %72 : vector<4x16x8xf32> to vector<4x16x8xbf16>
    %c0_36 = arith.constant 0 : index
    %c0_37 = arith.constant 0 : index
    %c0_38 = arith.constant 0 : index
    %74 = vector.load %arg6[%c0_36, %c0_37, %c0_38] : memref<4x8x32xbf16, #tpu.memory_space<vmem>>, vector<4x8x32xbf16>
    "tpu.trace_start"() <{level = 10 : i32, message = "htd,hdk->htk"}> : () -> ()
    %cst_39 = arith.constant dense<0.000000e+00> : vector<4x16x32xf32>
    %75 = tpu.matmul %73, %74, %cst_39 {dimension_numbers = #tpu.dot_dimension_numbers<[2], [1], [1], [2], [0, 0, 0, 1, 1, 2], [0], [0]>} : vector<4x16x8xbf16>, vector<4x8x32xbf16>, vector<4x16x32xf32> -> vector<4x16x32xf32>
    "tpu.trace_stop"() : () -> ()
    %cst_40 = arith.constant dense<0.000000e+00> : vector<16x32xf32>
    %76 = vector.multi_reduction <add>, %75, %cst_40 [0] : vector<4x16x32xf32> to vector<16x32xf32>
    %77 = arith.addf %0, %76 : vector<16x32xf32>
    %c0_41 = arith.constant 0 : index
    %c0_42 = arith.constant 0 : index
    %78 = vector.load %arg11[%c0_41, %c0_42] : memref<1x32xf32, #tpu.memory_space<vmem>>, vector<1x32xf32>
    %79 = arith.mulf %77, %77 : vector<16x32xf32>
    %cst_43 = arith.constant dense<0.000000e+00> : vector<16xf32>
    %80 = vector.multi_reduction <add>, %79, %cst_43 [1] : vector<16x32xf32> to vector<16xf32>
    %81 = vector.shape_cast %80 : vector<16xf32> to vector<16x1xf32>
    %cst_44 = arith.constant 3.200000e+01 : f32
    %82 = vector.broadcast %cst_44 : f32 to vector<16x1xf32>
    %83 = arith.divf %81, %82 : vector<16x1xf32>
    %cst_45 = arith.constant 9.99999974E-6 : f32
    %84 = vector.broadcast %cst_45 : f32 to vector<16x1xf32>
    %85 = arith.addf %83, %84 : vector<16x1xf32>
    %86 = math.rsqrt %85 : vector<16x1xf32>
    %87 = vector.broadcast %86 : vector<16x1xf32> to vector<16x32xf32>
    %88 = arith.mulf %77, %87 : vector<16x32xf32>
    %89 = vector.broadcast %78 : vector<1x32xf32> to vector<16x32xf32>
    %90 = arith.mulf %88, %89 : vector<16x32xf32>
    %91 = arith.truncf %90 : vector<16x32xf32> to vector<16x32xbf16>
    %c0_46 = arith.constant 0 : index
    %c0_47 = arith.constant 0 : index
    %92 = vector.load %arg7[%c0_46, %c0_47] : memref<32x64xbf16, #tpu.memory_space<vmem>>, vector<32x64xbf16>
    %cst_48 = arith.constant dense<0.000000e+00> : vector<16x64xf32>
    %93 = tpu.matmul %91, %92, %cst_48 {dimension_numbers = #tpu.dot_dimension_numbers<[1], [0], [0], [1], [0, 0, 1, 1], [], []>} : vector<16x32xbf16>, vector<32x64xbf16>, vector<16x64xf32> -> vector<16x64xf32>
    %c0_49 = arith.constant 0 : index
    %c0_50 = arith.constant 0 : index
    %94 = vector.load %arg8[%c0_49, %c0_50] : memref<32x64xbf16, #tpu.memory_space<vmem>>, vector<32x64xbf16>
    %cst_51 = arith.constant dense<0.000000e+00> : vector<16x64xf32>
    %95 = tpu.matmul %91, %94, %cst_51 {dimension_numbers = #tpu.dot_dimension_numbers<[1], [0], [0], [1], [0, 0, 1, 1], [], []>} : vector<16x32xbf16>, vector<32x64xbf16>, vector<16x64xf32> -> vector<16x64xf32>
    %cst_52 = arith.constant 0.000000e+00 : f32
    %96 = vector.broadcast %cst_52 : f32 to vector<16x64xf32>
    %97 = arith.subf %96, %93 : vector<16x64xf32>
    %98 = math.exp %97 : vector<16x64xf32>
    %cst_53 = arith.constant 1.000000e+00 : f32
    %99 = vector.broadcast %cst_53 : f32 to vector<16x64xf32>
    %100 = arith.addf %99, %98 : vector<16x64xf32>
    %101 = tpu.reciprocal %100 {approx = true} : vector<16x64xf32> -> vector<16x64xf32>
    %102 = arith.mulf %93, %101 : vector<16x64xf32>
    %103 = arith.mulf %102, %95 : vector<16x64xf32>
    %104 = arith.truncf %103 : vector<16x64xf32> to vector<16x64xbf16>
    %c0_54 = arith.constant 0 : index
    %c0_55 = arith.constant 0 : index
    %105 = vector.load %arg9[%c0_54, %c0_55] : memref<64x32xbf16, #tpu.memory_space<vmem>>, vector<64x32xbf16>
    %cst_56 = arith.constant dense<0.000000e+00> : vector<16x32xf32>
    %106 = tpu.matmul %104, %105, %cst_56 {dimension_numbers = #tpu.dot_dimension_numbers<[1], [0], [0], [1], [0, 0, 1, 1], [], []>} : vector<16x64xbf16>, vector<64x32xbf16>, vector<16x32xf32> -> vector<16x32xf32>
    %107 = arith.addf %77, %106 : vector<16x32xf32>
    %c0_57 = arith.constant 0 : index
    %c0_58 = arith.constant 0 : index
    %108 = vector.load %arg15[%c0_57, %c0_58] : memref<16x32xf32, #tpu.memory_space<vmem>>, vector<16x32xf32>
    tpu.vector_store %arg15[%c0_57, %c0_58], %107 {strides = array<i32>} : memref<16x32xf32, #tpu.memory_space<vmem>>, vector<16x32xf32>,
    return
  }
}

</mosaic_0001>

<llo_original>
// kernel: tpu_custom_call.1
$region0: #{tpu_custom_call.1}
  #allocation0 [shape = 'u32[]', space=smem, size = 0x4, offset = 0x4, fixed_abs, tag = 'smem constant byte address 0x4 - core index']
  #allocation1 [shape = 'u32[72,128]{1,0:T(1,128)}', space=vmem, size = 0x9000, scoped, tag = 'internal scratch']
  %s0 = inlined_call_operand.vmem [shape: f32[16,32], index: 0, kind: input, shape index: {}]
  %s1 = inlined_call_operand.vmem [shape: bf16[4,32,8], index: 1, kind: input, shape index: {}]
  %s2 = inlined_call_operand.vmem [shape: bf16[4,32,8], index: 2, kind: input, shape index: {}]
  %s3 = inlined_call_operand.vmem [shape: bf16[2,32,8], index: 3, kind: input, shape index: {}]
  %s4 = inlined_call_operand.vmem [shape: bf16[2,32,8], index: 4, kind: input, shape index: {}]
  %s5 = inlined_call_operand.vmem [shape: bf16[2,32,8], index: 5, kind: input, shape index: {}]
  %s6 = inlined_call_operand.vmem [shape: bf16[4,8,32], index: 6, kind: input, shape index: {}]
  %s7 = inlined_call_operand.vmem [shape: bf16[32,64], index: 7, kind: input, shape index: {}]
  %s8 = inlined_call_operand.vmem [shape: bf16[32,64], index: 8, kind: input, shape index: {}]
  %s9 = inlined_call_operand.vmem [shape: bf16[64,32], index: 9, kind: input, shape index: {}]
  %s10 = inlined_call_operand.vmem [shape: f32[1,32], index: 10, kind: input, shape index: {}]
  %s11 = inlined_call_operand.vmem [shape: f32[1,32], index: 11, kind: input, shape index: {}]
  %s12 = inlined_call_operand.vmem [shape: f32[16,8], index: 12, kind: input, shape index: {}]
  %s13 = inlined_call_operand.vmem [shape: f32[16,8], index: 13, kind: input, shape index: {}]
  %s14 = inlined_call_operand.vmem [shape: f32[16,16], index: 14, kind: input, shape index: {}]
  %s15 = inlined_call_operand.hbm [shape: f32[16,32], index: 15, kind: output, shape index: {}]
  %s16 = sld [smem:[#allocation0]]
  $region70: #{tpu_custom_call.1} parent=0
    _
  %s18 = ssub.s32 1, %s16
  %s19 = scalar_select 0, %s18, %s16
  $region1: #{tpu_custom_call.1} parent=0
    #allocation2 [shape = 'u8[8192]{0}', space=vmem, size = 0x2000, scoped, tag = 'output window, operand 0, single buffered']
    #allocation3 [shape = 's32[1]{0}', space=sflag, size = 0x4, scoped, tag = 'scoped memory for tpu_custom_call.1']
    %20 = vsyncpa [#allocation3], 0
    // Predicated region
    $region2: #{tpu_custom_call.1} parent=1 // pred_check
      _
    $region3: #{tpu_custom_call.1} parent=1 // pred_check_branch
      %22 = sbr.rel (0) target = $region5
    $region4: #{tpu_custom_call.1} parent=1 // pred_region
      _
    $region5: #{tpu_custom_call.1} parent=1 // pred_fallthru
      _
    // Predicated region
    $region6: #{tpu_custom_call.1} parent=1 // pred_check
      _
    $region7: #{tpu_custom_call.1} parent=1 // pred_check_branch
      %24 = sbr.rel (0) target = $region9
    $region8: #{tpu_custom_call.1} parent=1 // pred_region
      _
    $region9: #{tpu_custom_call.1} parent=1 // pred_fallthru
      _
    // Predicated region
    $region10: #{tpu_custom_call.1} parent=1 // pred_check
      _
    $region11: #{tpu_custom_call.1} parent=1 // pred_check_branch
      %26 = sbr.rel (0) target = $region13
    $region12: #{tpu_custom_call.1} parent=1 // pred_region
      _
    $region13: #{tpu_custom_call.1} parent=1 // pred_fallthru
      _
    // Predicated region
    $region14: #{tpu_custom_call.1} parent=1 // pred_check
      _
    $region15: #{tpu_custom_call.1} parent=1 // pred_check_branch
      %28 = sbr.rel (0) target = $region17
    $region16: #{tpu_custom_call.1} parent=1 // pred_region
      _
    $region17: #{tpu_custom_call.1} parent=1 // pred_fallthru
      _
    // Predicated region
    $region18: #{tpu_custom_call.1} parent=1 // pred_check
      _
    $region19: #{tpu_custom_call.1} parent=1 // pred_check_branch
      %30 = sbr.rel (0) target = $region21
    $region20: #{tpu_custom_call.1} parent=1 // pred_region
      _
    $region21: #{tpu_custom_call.1} parent=1 // pred_fallthru
      _
    // Predicated region
    $region22: #{tpu_custom_call.1} parent=1 // pred_check
      _
    $region23: #{tpu_custom_call.1} parent=1 // pred_check_branch
      %32 = sbr.rel (0) target = $region25
    $region24: #{tpu_custom_call.1} parent=1 // pred_region
      _
    $region25: #{tpu_custom_call.1} parent=1 // pred_fallthru
      _
    // Predicated region
    $region26: #{tpu_custom_call.1} parent=1 // pred_check
      _
    $region27: #{tpu_custom_call.1} parent=1 // pred_check_branch
      %34 = sbr.rel (0) target = $region29
    $region28: #{tpu_custom_call.1} parent=1 // pred_region
      _
    $region29: #{tpu_custom_call.1} parent=1 // pred_fallthru
      _
    // Predicated region
    $region30: #{tpu_custom_call.1} parent=1 // pred_check
      _
    $region31: #{tpu_custom_call.1} parent=1 // pred_check_branch
      %36 = sbr.rel (0) target = $region33
    $region32: #{tpu_custom_call.1} parent=1 // pred_region
      _
    $region33: #{tpu_custom_call.1} parent=1 // pred_fallthru
      _
    // Predicated region
    $region34: #{tpu_custom_call.1} parent=1 // pred_check
      _
    $region35: #{tpu_custom_call.1} parent=1 // pred_check_branch
      %38 = sbr.rel (0) target = $region37
    $region36: #{tpu_custom_call.1} parent=1 // pred_region
      _
    $region37: #{tpu_custom_call.1} parent=1 // pred_fallthru
      _
    // Predicated region
    $region38: #{tpu_custom_call.1} parent=1 // pred_check
      _
    $region39: #{tpu_custom_call.1} parent=1 // pred_check_branch
      %40 = sbr.rel (0) target = $region41
    $region40: #{tpu_custom_call.1} parent=1 // pred_region
      _
    $region41: #{tpu_custom_call.1} parent=1 // pred_fallthru
      _
    // Predicated region
    $region42: #{tpu_custom_call.1} parent=1 // pred_check
      _
    $region43: #{tpu_custom_call.1} parent=1 // pred_check_branch
      %42 = sbr.rel (0) target = $region45
    $region44: #{tpu_custom_call.1} parent=1 // pred_region
      _
    $region45: #{tpu_custom_call.1} parent=1 // pred_fallthru
      _
    // Predicated region
    $region46: #{tpu_custom_call.1} parent=1 // pred_check
      _
    $region47: #{tpu_custom_call.1} parent=1 // pred_check_branch
      %44 = sbr.rel (0) target = $region49
    $region48: #{tpu_custom_call.1} parent=1 // pred_region
      _
    $region49: #{tpu_custom_call.1} parent=1 // pred_fallthru
      _
    // Predicated region
    $region50: #{tpu_custom_call.1} parent=1 // pred_check
      _
    $region51: #{tpu_custom_call.1} parent=1 // pred_check_branch
      %46 = sbr.rel (0) target = $region53
    $region52: #{tpu_custom_call.1} parent=1 // pred_region
      _
    $region53: #{tpu_custom_call.1} parent=1 // pred_fallthru
      _
    // Predicated region
    $region54: #{tpu_custom_call.1} parent=1 // pred_check
      _
    $region55: #{tpu_custom_call.1} parent=1 // pred_check_branch
      %48 = sbr.rel (0) target = $region57
    $region56: #{tpu_custom_call.1} parent=1 // pred_region
      _
    $region57: #{tpu_custom_call.1} parent=1 // pred_fallthru
      _
    // Predicated region
    $region58: #{tpu_custom_call.1} parent=1 // pred_check
      _
    $region59: #{tpu_custom_call.1} parent=1 // pred_check_branch
      %50 = sbr.rel (0) target = $region61
    $region60: #{tpu_custom_call.1} parent=1 // pred_region
      _
    $region61: #{tpu_custom_call.1} parent=1 // pred_fallthru
      _
    %v52 = vld [vmem:[%s0] sm:$0xff]
    %v53 = vld [vmem:[%s0 + $0x8] sm:$0xff]
    %v54 = vld [vmem:[%s12] sm:$0xff]
    %v55 = vld [vmem:[%s12 + $0x8] sm:$0xff]
    %v56 = vld [vmem:[%s13] sm:$0xff]
    %v57 = vld [vmem:[%s13 + $0x8] sm:$0xff]
    %v58 = vld [vmem:[%s10] sm:$0x1]
    %v59 = vmul.f32 %v52, %v52
    %v60 = vmul.f32 %v53, %v53
    %vm61 = vcmask 261120
    %v62 = vsel %vm61, %v59, 0.0
    %63 = vadd.xlane.f32.xlu0 %v62
    %v64 = vpop.xlane.xlu0 %63
    %v65 = vsel %vm61, %v60, 0.0
    %66 = vadd.xlane.f32.xlu0 %v65
    %v67 = vpop.xlane.xlu0 %66
    %v68 = vrcp.pop 32.0
    %v69 = vmul.f32 32.0, %v68
    %v70 = vsub.f32 1.0, %v69
    %v71 = vmul.f32 %v68, %v70
    %v72 = vadd.f32 %v68, %v71
    %vm73 = vweird.f32 %v68
    %v74 = vsel %vm73, %v68, %v72
    %v75 = vmul.f32 %v64, %v74
    %v76 = vmul.f32 %v67, %v74
    %v77 = vadd.f32 %v75, 1e-05
    %v78 = vadd.f32 %v76, 1e-05
    %v79 = vrsqrt.pop %v77
    %v80 = vmul.f32 %v79, %v77
    %v81 = vmul.f32 %v80, %v79
    %v82 = vmul.f32 0.5, %v81
    %v83 = vsub.f32 1.5, %v82
    %v84 = vmul.f32 %v79, %v83
    %vm85 = vweird.f32 %v77
    %vm86 = vweird.f32 %v79
    %vm87 = vmor %vm85, %vm86
    %v88 = vsel %vm87, %v79, %v84
    %v89 = vrsqrt.pop %v78
    %v90 = vmul.f32 %v89, %v78
    %v91 = vmul.f32 %v90, %v89
    %v92 = vmul.f32 0.5, %v91
    %v93 = vsub.f32 1.5, %v92
    %v94 = vmul.f32 %v89, %v93
    %vm95 = vweird.f32 %v78
    %vm96 = vweird.f32 %v89
    %vm97 = vmor %vm95, %vm96
    %v98 = vsel %vm97, %v89, %v94
    %v99 = vmul.f32 %v52, %v88
    %v100 = vmul.f32 %v53, %v98
    %v102 = vperm.slane %v58, 0
    %v104 = vmul.f32 %v99, %v102
    %v105 = vmul.f32 %v100, %v102
    %v106 = vpack.c.bf16 %v104, %v104
    %v107 = vpack.c.bf16 %v105, %v105
    %v108 = vld [vmem:[%s1] sm:$0xf]
    %v109 = vld [vmem:[%s1 + $0x4] sm:$0xf]
    %v110 = vld [vmem:[%s1 + $0x8] sm:$0xf]
    %v111 = vld [vmem:[%s1 + $0xc] sm:$0xf]
    %v112 = vld [vmem:[%s1 + $0x10] sm:$0xf]
    %v113 = vld [vmem:[%s1 + $0x14] sm:$0xf]
    %v114 = vld [vmem:[%s1 + $0x18] sm:$0xf]
    %v115 = vld [vmem:[%s1 + $0x1c] sm:$0xf]
    %v116 = vld [vmem:[%s1 + $0x20] sm:$0xf]
    %v117 = vld [vmem:[%s1 + $0x24] sm:$0xf]
    %v118 = vld [vmem:[%s1 + $0x28] sm:$0xf]
    %v119 = vld [vmem:[%s1 + $0x2c] sm:$0xf]
    %v120 = vld [vmem:[%s1 + $0x30] sm:$0xf]
    %v121 = vld [vmem:[%s1 + $0x34] sm:$0xf]
    %v122 = vld [vmem:[%s1 + $0x38] sm:$0xf]
    %v123 = vld [vmem:[%s1 + $0x3c] sm:$0xf]
    %v126 = vunpack.c.l.b16 %v106
    %v127 = vunpack.c.l.b16 %v107
    %v128 = vpack.c.b16 %v127, %v126
    %v133 = vunpack.c.l.b16 %v108
    %v134 = vunpack.c.l.b16 %v109
    %v135 = vunpack.c.l.b16 %v110
    %v136 = vunpack.c.l.b16 %v111
    %v137 = vpack.c.b16 %v134, %v133
    %v138 = vpack.c.b16 %v136, %v135
    %v142 = vsel %vm61, %v128, 0
    %144 = vmatpush.bf16.msra.mxu0 0
    %145 = vmatpush.bf16.msra.mxu0 0
    %146 = vmatpush.bf16.msra.mxu0 0
    %147 = vmatpush.bf16.msra.mxu0 0
    %148 = vmatpush.bf16.msra.mxu0 0
    %149 = vmatpush.bf16.msra.mxu0 0
    %150 = vmatpush.bf16.msra.mxu0 %v138
    %151 = vmatpush.bf16.msra.mxu0 %v137
    %152 = vmatmul.bf16.gmra.mxu0 %v142
    %v153 = vpop.f32.mrf.mxu0
    %v154 = vadd.f32 0.0, %v153
    %v155 = vpop.f32.mrf.mxu0
    %v156 = vadd.f32 0.0, %v155
    %157 = vdwg.mxu0
    %v162 = vunpack.c.l.b16 %v112
    %v163 = vunpack.c.l.b16 %v113
    %v164 = vunpack.c.l.b16 %v114
    %v165 = vunpack.c.l.b16 %v115
    %v166 = vpack.c.b16 %v163, %v162
    %v167 = vpack.c.b16 %v165, %v164
    %170 = vmatpush.bf16.msra.mxu0 0
    %171 = vmatpush.bf16.msra.mxu0 0
    %172 = vmatpush.bf16.msra.mxu0 0
    %173 = vmatpush.bf16.msra.mxu0 0
    %174 = vmatpush.bf16.msra.mxu0 0
    %175 = vmatpush.bf16.msra.mxu0 0
    %176 = vmatpush.bf16.msra.mxu0 %v167
    %177 = vmatpush.bf16.msra.mxu0 %v166
    %178 = vmatmul.bf16.gmra.mxu0 %v142
    %v179 = vpop.f32.mrf.mxu0
    %v180 = vadd.f32 0.0, %v179
    %v181 = vpop.f32.mrf.mxu0
    %v182 = vadd.f32 0.0, %v181
    %183 = vdwg.mxu0
    %v188 = vunpack.c.l.b16 %v116
    %v189 = vunpack.c.l.b16 %v117
    %v190 = vunpack.c.l.b16 %v118
    %v191 = vunpack.c.l.b16 %v119
    %v192 = vpack.c.b16 %v189, %v188
    %v193 = vpack.c.b16 %v191, %v190
    %196 = vmatpush.bf16.msra.mxu0 0
    %197 = vmatpush.bf16.msra.mxu0 0
    %198 = vmatpush.bf16.msra.mxu0 0
    %199 = vmatpush.bf16.msra.mxu0 0
    %200 = vmatpush.bf16.msra.mxu0 0
    %201 = vmatpush.bf16.msra.mxu0 0
    %202 = vmatpush.bf16.msra.mxu0 %v193
    %203 = vmatpush.bf16.msra.mxu0 %v192
    %204 = vmatmul.bf16.gmra.mxu0 %v142
    %v205 = vpop.f32.mrf.mxu0
    %v206 = vadd.f32 0.0, %v205
    %v207 = vpop.f32.mrf.mxu0
    %v208 = vadd.f32 0.0, %v207
    %209 = vdwg.mxu0
    %v214 = vunpack.c.l.b16 %v120
    %v215 = vunpack.c.l.b16 %v121
    %v216 = vunpack.c.l.b16 %v122
    %v217 = vunpack.c.l.b16 %v123
    %v218 = vpack.c.b16 %v215, %v214
    %v219 = vpack.c.b16 %v217, %v216
    %222 = vmatpush.bf16.msra.mxu0 0
    %223 = vmatpush.bf16.msra.mxu0 0
    %224 = vmatpush.bf16.msra.mxu0 0
    %225 = vmatpush.bf16.msra.mxu0 0
    %226 = vmatpush.bf16.msra.mxu0 0
    %227 = vmatpush.bf16.msra.mxu0 0
    %228 = vmatpush.bf16.msra.mxu0 %v219
    %229 = vmatpush.bf16.msra.mxu0 %v218
    %230 = vmatmul.bf16.gmra.mxu0 %v142
    %v231 = vpop.f32.mrf.mxu0
    %v232 = vadd.f32 0.0, %v231
    %v233 = vpop.f32.mrf.mxu0
    %v234 = vadd.f32 0.0, %v233
    %235 = vdwg.mxu0
    %v236 = vld [vmem:[%s2] sm:$0xf]
    %v237 = vld [vmem:[%s2 + $0x4] sm:$0xf]
    %v238 = vld [vmem:[%s2 + $0x8] sm:$0xf]
    %v239 = vld [vmem:[%s2 + $0xc] sm:$0xf]
    %v240 = vld [vmem:[%s2 + $0x10] sm:$0xf]
    %v241 = vld [vmem:[%s2 + $0x14] sm:$0xf]
    %v242 = vld [vmem:[%s2 + $0x18] sm:$0xf]
    %v243 = vld [vmem:[%s2 + $0x1c] sm:$0xf]
    %v244 = vld [vmem:[%s2 + $0x20] sm:$0xf]
    %v245 = vld [vmem:[%s2 + $0x24] sm:$0xf]
    %v246 = vld [vmem:[%s2 + $0x28] sm:$0xf]
    %v247 = vld [vmem:[%s2 + $0x2c] sm:$0xf]
    %v248 = vld [vmem:[%s2 + $0x30] sm:$0xf]
    %v249 = vld [vmem:[%s2 + $0x34] sm:$0xf]
    %v250 = vld [vmem:[%s2 + $0x38] sm:$0xf]
    %v251 = vld [vmem:[%s2 + $0x3c] sm:$0xf]
    %v256 = vunpack.c.l.b16 %v236
    %v257 = vunpack.c.l.b16 %v237
    %v258 = vunpack.c.l.b16 %v238
    %v259 = vunpack.c.l.b16 %v239
    %v260 = vpack.c.b16 %v257, %v256
    %v261 = vpack.c.b16 %v259, %v258
    %264 = vmatpush.bf16.msra.mxu0 0
    %265 = vmatpush.bf16.msra.mxu0 0
    %266 = vmatpush.bf16.msra.mxu0 0
    %267 = vmatpush.bf16.msra.mxu0 0
    %268 = vmatpush.bf16.msra.mxu0 0
    %269 = vmatpush.bf16.msra.mxu0 0
    %270 = vmatpush.bf16.msra.mxu0 %v261
    %271 = vmatpush.bf16.msra.mxu0 %v260
    %272 = vmatmul.bf16.gmra.mxu0 %v142
    %v273 = vpop.f32.mrf.mxu0
    %v274 = vadd.f32 0.0, %v273
    %v275 = vpop.f32.mrf.mxu0
    %v276 = vadd.f32 0.0, %v275
    %277 = vdwg.mxu0
    %v282 = vunpack.c.l.b16 %v240
    %v283 = vunpack.c.l.b16 %v241
    %v284 = vunpack.c.l.b16 %v242
    %v285 = vunpack.c.l.b16 %v243
    %v286 = vpack.c.b16 %v283, %v282
    %v287 = vpack.c.b16 %v285, %v284
    %290 = vmatpush.bf16.msra.mxu0 0
    %291 = vmatpush.bf16.msra.mxu0 0
    %292 = vmatpush.bf16.msra.mxu0 0
    %293 = vmatpush.bf16.msra.mxu0 0
    %294 = vmatpush.bf16.msra.mxu0 0
    %295 = vmatpush.bf16.msra.mxu0 0
    %296 = vmatpush.bf16.msra.mxu0 %v287
    %297 = vmatpush.bf16.msra.mxu0 %v286
    %298 = vmatmul.bf16.gmra.mxu0 %v142
    %v299 = vpop.f32.mrf.mxu0
    %v300 = vadd.f32 0.0, %v299
    %v301 = vpop.f32.mrf.mxu0
    %v302 = vadd.f32 0.0, %v301
    %303 = vdwg.mxu0
    %v308 = vunpack.c.l.b16 %v244
    %v309 = vunpack.c.l.b16 %v245
    %v310 = vunpack.c.l.b16 %v246
    %v311 = vunpack.c.l.b16 %v247
    %v312 = vpack.c.b16 %v309, %v308
    %v313 = vpack.c.b16 %v311, %v310
    %316 = vmatpush.bf16.msra.mxu0 0
    %317 = vmatpush.bf16.msra.mxu0 0
    %318 = vmatpush.bf16.msra.mxu0 0
    %319 = vmatpush.bf16.msra.mxu0 0
    %320 = vmatpush.bf16.msra.mxu0 0
    %321 = vmatpush.bf16.msra.mxu0 0
    %322 = vmatpush.bf16.msra.mxu0 %v313
    %323 = vmatpush.bf16.msra.mxu0 %v312
    %324 = vmatmul.bf16.gmra.mxu0 %v142
    %v325 = vpop.f32.mrf.mxu0
    %v326 = vadd.f32 0.0, %v325
    %v327 = vpop.f32.mrf.mxu0
    %v328 = vadd.f32 0.0, %v327
    %329 = vdwg.mxu0
    %v334 = vunpack.c.l.b16 %v248
    %v335 = vunpack.c.l.b16 %v249
    %v336 = vunpack.c.l.b16 %v250
    %v337 = vunpack.c.l.b16 %v251
    %v338 = vpack.c.b16 %v335, %v334
    %v339 = vpack.c.b16 %v337, %v336
    %342 = vmatpush.bf16.msra.mxu0 0
    %343 = vmatpush.bf16.msra.mxu0 0
    %344 = vmatpush.bf16.msra.mxu0 0
    %345 = vmatpush.bf16.msra.mxu0 0
    %346 = vmatpush.bf16.msra.mxu0 0
    %347 = vmatpush.bf16.msra.mxu0 0
    %348 = vmatpush.bf16.msra.mxu0 %v339
    %349 = vmatpush.bf16.msra.mxu0 %v338
    %350 = vmatmul.bf16.gmra.mxu0 %v142
    %v351 = vpop.f32.mrf.mxu0
    %v352 = vadd.f32 0.0, %v351
    %v353 = vpop.f32.mrf.mxu0
    %v354 = vadd.f32 0.0, %v353
    %355 = vdwg.mxu0
    %v356 = vld [vmem:[%s3] sm:$0xf]
    %v357 = vld [vmem:[%s3 + $0x4] sm:$0xf]
    %v358 = vld [vmem:[%s3 + $0x8] sm:$0xf]
    %v359 = vld [vmem:[%s3 + $0xc] sm:$0xf]
    %v360 = vld [vmem:[%s3 + $0x10] sm:$0xf]
    %v361 = vld [vmem:[%s3 + $0x14] sm:$0xf]
    %v362 = vld [vmem:[%s3 + $0x18] sm:$0xf]
    %v363 = vld [vmem:[%s3 + $0x1c] sm:$0xf]
    %v368 = vunpack.c.l.b16 %v356
    %v369 = vunpack.c.l.b16 %v357
    %v370 = vunpack.c.l.b16 %v358
    %v371 = vunpack.c.l.b16 %v359
    %v372 = vpack.c.b16 %v369, %v368
    %v373 = vpack.c.b16 %v371, %v370
    %376 = vmatpush.bf16.msra.mxu0 0
    %377 = vmatpush.bf16.msra.mxu0 0
    %378 = vmatpush.bf16.msra.mxu0 0
    %379 = vmatpush.bf16.msra.mxu0 0
    %380 = vmatpush.bf16.msra.mxu0 0
    %381 = vmatpush.bf16.msra.mxu0 0
    %382 = vmatpush.bf16.msra.mxu0 %v373
    %383 = vmatpush.bf16.msra.mxu0 %v372
    %384 = vmatmul.bf16.gmra.mxu0 %v142
    %v385 = vpop.f32.mrf.mxu0
    %v386 = vadd.f32 0.0, %v385
    %v387 = vpop.f32.mrf.mxu0
    %v388 = vadd.f32 0.0, %v387
    %389 = vdwg.mxu0
    %v394 = vunpack.c.l.b16 %v360
    %v395 = vunpack.c.l.b16 %v361
    %v396 = vunpack.c.l.b16 %v362
    %v397 = vunpack.c.l.b16 %v363
    %v398 = vpack.c.b16 %v395, %v394
    %v399 = vpack.c.b16 %v397, %v396
    %402 = vmatpush.bf16.msra.mxu0 0
    %403 = vmatpush.bf16.msra.mxu0 0
    %404 = vmatpush.bf16.msra.mxu0 0
    %405 = vmatpush.bf16.msra.mxu0 0
    %406 = vmatpush.bf16.msra.mxu0 0
    %407 = vmatpush.bf16.msra.mxu0 0
    %408 = vmatpush.bf16.msra.mxu0 %v399
    %409 = vmatpush.bf16.msra.mxu0 %v398
    %410 = vmatmul.bf16.gmra.mxu0 %v142
    %v411 = vpop.f32.mrf.mxu0
    %v412 = vadd.f32 0.0, %v411
    %v413 = vpop.f32.mrf.mxu0
    %v414 = vadd.f32 0.0, %v413
    %415 = vdwg.mxu0
    %v416 = vld [vmem:[%s4] sm:$0xf]
    %v417 = vld [vmem:[%s4 + $0x4] sm:$0xf]
    %v418 = vld [vmem:[%s4 + $0x8] sm:$0xf]
    %v419 = vld [vmem:[%s4 + $0xc] sm:$0xf]
    %v420 = vld [vmem:[%s4 + $0x10] sm:$0xf]
    %v421 = vld [vmem:[%s4 + $0x14] sm:$0xf]
    %v422 = vld [vmem:[%s4 + $0x18] sm:$0xf]
    %v423 = vld [vmem:[%s4 + $0x1c] sm:$0xf]
    %v428 = vunpack.c.l.b16 %v416
    %v429 = vunpack.c.l.b16 %v417
    %v430 = vunpack.c.l.b16 %v418
    %v431 = vunpack.c.l.b16 %v419
    %v432 = vpack.c.b16 %v429, %v428
    %v433 = vpack.c.b16 %v431, %v430
    %436 = vmatpush.bf16.msra.mxu0 0
    %437 = vmatpush.bf16.msra.mxu0 0
    %438 = vmatpush.bf16.msra.mxu0 0
    %439 = vmatpush.bf16.msra.mxu0 0
    %440 = vmatpush.bf16.msra.mxu0 0
    %441 = vmatpush.bf16.msra.mxu0 0
    %442 = vmatpush.bf16.msra.mxu0 %v433
    %443 = vmatpush.bf16.msra.mxu0 %v432
    %444 = vmatmul.bf16.gmra.mxu0 %v142
    %v445 = vpop.f32.mrf.mxu0
    %v446 = vadd.f32 0.0, %v445
    %v447 = vpop.f32.mrf.mxu0
    %v448 = vadd.f32 0.0, %v447
    %449 = vdwg.mxu0
    %v454 = vunpack.c.l.b16 %v420
    %v455 = vunpack.c.l.b16 %v421
    %v456 = vunpack.c.l.b16 %v422
    %v457 = vunpack.c.l.b16 %v423
    %v458 = vpack.c.b16 %v455, %v454
    %v459 = vpack.c.b16 %v457, %v456
    %462 = vmatpush.bf16.msra.mxu0 0
    %463 = vmatpush.bf16.msra.mxu0 0
    %464 = vmatpush.bf16.msra.mxu0 0
    %465 = vmatpush.bf16.msra.mxu0 0
    %466 = vmatpush.bf16.msra.mxu0 0
    %467 = vmatpush.bf16.msra.mxu0 0
    %468 = vmatpush.bf16.msra.mxu0 %v459
    %469 = vmatpush.bf16.msra.mxu0 %v458
    %470 = vmatmul.bf16.gmra.mxu0 %v142
    %v471 = vpop.f32.mrf.mxu0
    %v472 = vadd.f32 0.0, %v471
    %v473 = vpop.f32.mrf.mxu0
    %v474 = vadd.f32 0.0, %v473
    %475 = vdwg.mxu0
    %v476 = vld [vmem:[%s5] sm:$0xf]
    %v477 = vld [vmem:[%s5 + $0x4] sm:$0xf]
    %v478 = vld [vmem:[%s5 + $0x8] sm:$0xf]
    %v479 = vld [vmem:[%s5 + $0xc] sm:$0xf]
    %v480 = vld [vmem:[%s5 + $0x10] sm:$0xf]
    %v481 = vld [vmem:[%s5 + $0x14] sm:$0xf]
    %v482 = vld [vmem:[%s5 + $0x18] sm:$0xf]
    %v483 = vld [vmem:[%s5 + $0x1c] sm:$0xf]
    %v488 = vunpack.c.l.b16 %v476
    %v489 = vunpack.c.l.b16 %v477
    %v490 = vunpack.c.l.b16 %v478
    %v491 = vunpack.c.l.b16 %v479
    %v492 = vpack.c.b16 %v489, %v488
    %v493 = vpack.c.b16 %v491, %v490
    %496 = vmatpush.bf16.msra.mxu0 0
    %497 = vmatpush.bf16.msra.mxu0 0
    %498 = vmatpush.bf16.msra.mxu0 0
    %499 = vmatpush.bf16.msra.mxu0 0
    %500 = vmatpush.bf16.msra.mxu0 0
    %501 = vmatpush.bf16.msra.mxu0 0
    %502 = vmatpush.bf16.msra.mxu0 %v493
    %503 = vmatpush.bf16.msra.mxu0 %v492
    %504 = vmatmul.bf16.gmra.mxu0 %v142
    %v505 = vpop.f32.mrf.mxu0
    %v506 = vadd.f32 0.0, %v505
    %v507 = vpop.f32.mrf.mxu0
    %v508 = vadd.f32 0.0, %v507
    %509 = vdwg.mxu0
    %v514 = vunpack.c.l.b16 %v480
    %v515 = vunpack.c.l.b16 %v481
    %v516 = vunpack.c.l.b16 %v482
    %v517 = vunpack.c.l.b16 %v483
    %v518 = vpack.c.b16 %v515, %v514
    %v519 = vpack.c.b16 %v517, %v516
    %522 = vmatpush.bf16.msra.mxu0 0
    %523 = vmatpush.bf16.msra.mxu0 0
    %524 = vmatpush.bf16.msra.mxu0 0
    %525 = vmatpush.bf16.msra.mxu0 0
    %526 = vmatpush.bf16.msra.mxu0 0
    %527 = vmatpush.bf16.msra.mxu0 0
    %528 = vmatpush.bf16.msra.mxu0 %v519
    %529 = vmatpush.bf16.msra.mxu0 %v518
    %530 = vmatmul.bf16.gmra.mxu0 %v142
    %v531 = vpop.f32.mrf.mxu0
    %v532 = vadd.f32 0.0, %v531
    %v533 = vpop.f32.mrf.mxu0
    %v534 = vadd.f32 0.0, %v533
    %535 = vdwg.mxu0
    %v536 = vmul.f32 %v154, %v54
    %v537 = vmul.f32 %v156, %v55
    %v538 = vmul.f32 %v180, %v54
    %v539 = vmul.f32 %v182, %v55
    %v540 = vmul.f32 %v206, %v54
    %v541 = vmul.f32 %v208, %v55
    %v542 = vmul.f32 %v232, %v54
    %v543 = vmul.f32 %v234, %v55
    %v544 = vmul.f32 %v274, %v56
    %v545 = vmul.f32 %v276, %v57
    %v546 = vmul.f32 %v300, %v56
    %v547 = vmul.f32 %v302, %v57
    %v548 = vmul.f32 %v326, %v56
    %v549 = vmul.f32 %v328, %v57
    %v550 = vmul.f32 %v352, %v56
    %v551 = vmul.f32 %v354, %v57
    %v552 = vadd.f32 %v536, %v544
    %v553 = vadd.f32 %v537, %v545
    %v554 = vadd.f32 %v538, %v546
    %v555 = vadd.f32 %v539, %v547
    %v556 = vadd.f32 %v540, %v548
    %v557 = vadd.f32 %v541, %v549
    %v558 = vadd.f32 %v542, %v550
    %v559 = vadd.f32 %v543, %v551
    %v560 = vmul.f32 %v386, %v54
    %v561 = vmul.f32 %v388, %v55
    %v562 = vmul.f32 %v412, %v54
    %v563 = vmul.f32 %v414, %v55
    %v564 = vmul.f32 %v446, %v56
    %v565 = vmul.f32 %v448, %v57
    %v566 = vmul.f32 %v472, %v56
    %v567 = vmul.f32 %v474, %v57
    %v568 = vadd.f32 %v560, %v564
    %v569 = vadd.f32 %v561, %v565
    %v570 = vadd.f32 %v562, %v566
    %v571 = vadd.f32 %v563, %v567
    %v572 = vpack.c.bf16 %v552, %v552
    %v573 = vpack.c.bf16 %v553, %v553
    %v574 = vpack.c.bf16 %v554, %v554
    %v575 = vpack.c.bf16 %v555, %v555
    %v576 = vpack.c.bf16 %v556, %v556
    %v577 = vpack.c.bf16 %v557, %v557
    %v578 = vpack.c.bf16 %v558, %v558
    %v579 = vpack.c.bf16 %v559, %v559
    %v580 = vpack.c.bf16 %v568, %v568
    %v581 = vpack.c.bf16 %v569, %v569
    %v582 = vpack.c.bf16 %v570, %v570
    %v583 = vpack.c.bf16 %v571, %v571
    %v586 = vunpack.c.l.b16 %v572
    %v587 = vunpack.c.l.b16 %v573
    %v588 = vpack.c.b16 %v587, %v586
    %v591 = vunpack.c.l.b16 %v580
    %v592 = vunpack.c.l.b16 %v581
    %v593 = vpack.c.b16 %v592, %v591
    %vm594 = vcmask 64512
    %v596 = vsel %vm594, %v588, 0
    %v599 = vsel %vm594, %v593, 0
    %601 = vmatpush.bf16.xpose.msra.mxu0 0
    %602 = vmatpush.bf16.xpose.msra.mxu0 0
    %603 = vmatpush.bf16.xpose.msra.mxu0 0
    %604 = vmatpush.bf16.xpose.msra.mxu0 0
    %605 = vmatpush.bf16.xpose.msra.mxu0 0
    %606 = vmatpush.bf16.xpose.msra.mxu0 0
    %607 = vmatpush.bf16.xpose.msra.mxu0 0
    %608 = vmatpush.bf16.xpose.msra.mxu0 %v599
    %609 = vmatmul.bf16.gmra.mxu0 %v596
    %v610 = vpop.f32.mrf.mxu0
    %v611 = vadd.f32 0.0, %v610
    %v612 = vpop.f32.mrf.mxu0
    %v613 = vadd.f32 0.0, %v612
    %614 = vdwg.mxu0
    %v617 = vunpack.c.l.b16 %v574
    %v618 = vunpack.c.l.b16 %v575
    %v619 = vpack.c.b16 %v618, %v617
    %v621 = vsel %vm594, %v619, 0
    %623 = vmatpush.bf16.xpose.msra.mxu0 0
    %624 = vmatpush.bf16.xpose.msra.mxu0 0
    %625 = vmatpush.bf16.xpose.msra.mxu0 0
    %626 = vmatpush.bf16.xpose.msra.mxu0 0
    %627 = vmatpush.bf16.xpose.msra.mxu0 0
    %628 = vmatpush.bf16.xpose.msra.mxu0 0
    %629 = vmatpush.bf16.xpose.msra.mxu0 0
    %630 = vmatpush.bf16.xpose.msra.mxu0 %v599
    %631 = vmatmul.bf16.gmra.mxu0 %v621
    %v632 = vpop.f32.mrf.mxu0
    %v633 = vadd.f32 0.0, %v632
    %v634 = vpop.f32.mrf.mxu0
    %v635 = vadd.f32 0.0, %v634
    %636 = vdwg.mxu0
    %v639 = vunpack.c.l.b16 %v576
    %v640 = vunpack.c.l.b16 %v577
    %v641 = vpack.c.b16 %v640, %v639
    %v644 = vunpack.c.l.b16 %v582
    %v645 = vunpack.c.l.b16 %v583
    %v646 = vpack.c.b16 %v645, %v644
    %v648 = vsel %vm594, %v641, 0
    %v651 = vsel %vm594, %v646, 0
    %653 = vmatpush.bf16.xpose.msra.mxu0 0
    %654 = vmatpush.bf16.xpose.msra.mxu0 0
    %655 = vmatpush.bf16.xpose.msra.mxu0 0
    %656 = vmatpush.bf16.xpose.msra.mxu0 0
    %657 = vmatpush.bf16.xpose.msra.mxu0 0
    %658 = vmatpush.bf16.xpose.msra.mxu0 0
    %659 = vmatpush.bf16.xpose.msra.mxu0 0
    %660 = vmatpush.bf16.xpose.msra.mxu0 %v651
    %661 = vmatmul.bf16.gmra.mxu0 %v648
    %v662 = vpop.f32.mrf.mxu0
    %v663 = vadd.f32 0.0, %v662
    %v664 = vpop.f32.mrf.mxu0
    %v665 = vadd.f32 0.0, %v664
    %666 = vdwg.mxu0
    %v669 = vunpack.c.l.b16 %v578
    %v670 = vunpack.c.l.b16 %v579
    %v671 = vpack.c.b16 %v670, %v669
    %v673 = vsel %vm594, %v671, 0
    %675 = vmatpush.bf16.xpose.msra.mxu0 0
    %676 = vmatpush.bf16.xpose.msra.mxu0 0
    %677 = vmatpush.bf16.xpose.msra.mxu0 0
    %678 = vmatpush.bf16.xpose.msra.mxu0 0
    %679 = vmatpush.bf16.xpose.msra.mxu0 0
    %680 = vmatpush.bf16.xpose.msra.mxu0 0
    %681 = vmatpush.bf16.xpose.msra.mxu0 0
    %682 = vmatpush.bf16.xpose.msra.mxu0 %v651
    %683 = vmatmul.bf16.gmra.mxu0 %v673
    %v684 = vpop.f32.mrf.mxu0
    %v685 = vadd.f32 0.0, %v684
    %v686 = vpop.f32.mrf.mxu0
    %v687 = vadd.f32 0.0, %v686
    %688 = vdwg.mxu0
    %v689 = vmul.f32 %v611, 0.35355338
    %v690 = vmul.f32 %v613, 0.35355338
    %v691 = vmul.f32 %v633, 0.35355338
    %v692 = vmul.f32 %v635, 0.35355338
    %v693 = vmul.f32 %v663, 0.35355338
    %v694 = vmul.f32 %v665, 0.35355338
    %v695 = vmul.f32 %v685, 0.35355338
    %v696 = vmul.f32 %v687, 0.35355338
    %v697 = vld [vmem:[%s14] sm:$0xff]
    %v698 = vld [vmem:[%s14 + $0x8] sm:$0xff]
    %v699 = vadd.f32 %v689, %v697
    %v700 = vadd.f32 %v690, %v698
    %v701 = vadd.f32 %v691, %v697
    %v702 = vadd.f32 %v692, %v698
    %v703 = vadd.f32 %v693, %v697
    %v704 = vadd.f32 %v694, %v698
    %v705 = vadd.f32 %v695, %v697
    %v706 = vadd.f32 %v696, %v698
    %vm707 = vcmask 130048
    %v708 = vsel %vm707, %v699, -inf
    %709 = vmax.xlane.f32.xlu0 %v708
    %v710 = vpop.xlane.xlu0 %709
    %v711 = vsel %vm707, %v700, -inf
    %712 = vmax.xlane.f32.xlu0 %v711
    %v713 = vpop.xlane.xlu0 %712
    %v714 = vsel %vm707, %v701, -inf
    %715 = vmax.xlane.f32.xlu0 %v714
    %v716 = vpop.xlane.xlu0 %715
    %v717 = vsel %vm707, %v702, -inf
    %718 = vmax.xlane.f32.xlu0 %v717
    %v719 = vpop.xlane.xlu0 %718
    %v720 = vsel %vm707, %v703, -inf
    %721 = vmax.xlane.f32.xlu0 %v720
    %v722 = vpop.xlane.xlu0 %721
    %v723 = vsel %vm707, %v704, -inf
    %724 = vmax.xlane.f32.xlu0 %v723
    %v725 = vpop.xlane.xlu0 %724
    %v726 = vsel %vm707, %v705, -inf
    %727 = vmax.xlane.f32.xlu0 %v726
    %v728 = vpop.xlane.xlu0 %727
    %v729 = vsel %vm707, %v706, -inf
    %730 = vmax.xlane.f32.xlu0 %v729
    %v731 = vpop.xlane.xlu0 %730
    %v732 = vsub.f32 %v699, %v710
    %v733 = vsub.f32 %v700, %v713
    %v734 = vsub.f32 %v701, %v716
    %v735 = vsub.f32 %v702, %v719
    %v736 = vsub.f32 %v703, %v722
    %v737 = vsub.f32 %v704, %v725
    %v738 = vsub.f32 %v705, %v728
    %v739 = vsub.f32 %v706, %v731
    %v740 = vmul.f32 %v732, 1.442695
    %v741 = vpow.pop %v740
    %v742 = vmul.f32 %v733, 1.442695
    %v743 = vpow.pop %v742
    %v744 = vmul.f32 %v734, 1.442695
    %v745 = vpow.pop %v744
    %v746 = vmul.f32 %v735, 1.442695
    %v747 = vpow.pop %v746
    %v748 = vmul.f32 %v736, 1.442695
    %v749 = vpow.pop %v748
    %v750 = vmul.f32 %v737, 1.442695
    %v751 = vpow.pop %v750
    %v752 = vmul.f32 %v738, 1.442695
    %v753 = vpow.pop %v752
    %v754 = vmul.f32 %v739, 1.442695
    %v755 = vpow.pop %v754
    %v756 = vsel %vm707, %v741, 0.0
    %757 = vadd.xlane.f32.xlu0 %v756
    %v758 = vpop.xlane.xlu0 %757
    %v759 = vsel %vm707, %v743, 0.0
    %760 = vadd.xlane.f32.xlu0 %v759
    %v761 = vpop.xlane.xlu0 %760
    %v762 = vsel %vm707, %v745, 0.0
    %763 = vadd.xlane.f32.xlu0 %v762
    %v764 = vpop.xlane.xlu0 %763
    %v765 = vsel %vm707, %v747, 0.0
    %766 = vadd.xlane.f32.xlu0 %v765
    %v767 = vpop.xlane.xlu0 %766
    %v768 = vsel %vm707, %v749, 0.0
    %769 = vadd.xlane.f32.xlu0 %v768
    %v770 = vpop.xlane.xlu0 %769
    %v771 = vsel %vm707, %v751, 0.0
    %772 = vadd.xlane.f32.xlu0 %v771
    %v773 = vpop.xlane.xlu0 %772
    %v774 = vsel %vm707, %v753, 0.0
    %775 = vadd.xlane.f32.xlu0 %v774
    %v776 = vpop.xlane.xlu0 %775
    %v777 = vsel %vm707, %v755, 0.0
    %778 = vadd.xlane.f32.xlu0 %v777
    %v779 = vpop.xlane.xlu0 %778
    %v780 = vrcp.pop %v758
    %v781 = vrcp.pop %v761
    %v782 = vrcp.pop %v764
    %v783 = vrcp.pop %v767
    %v784 = vrcp.pop %v770
    %v785 = vrcp.pop %v773
    %v786 = vrcp.pop %v776
    %v787 = vrcp.pop %v779
    %v788 = vmul.f32 %v741, %v780
    %v789 = vmul.f32 %v743, %v781
    %v790 = vmul.f32 %v745, %v782
    %v791 = vmul.f32 %v747, %v783
    %v792 = vmul.f32 %v749, %v784
    %v793 = vmul.f32 %v751, %v785
    %v794 = vmul.f32 %v753, %v786
    %v795 = vmul.f32 %v755, %v787
    %v796 = vpack.c.bf16 %v788, %v788
    %v797 = vpack.c.bf16 %v789, %v789
    %v798 = vpack.c.bf16 %v790, %v790
    %v799 = vpack.c.bf16 %v791, %v791
    %v800 = vpack.c.bf16 %v792, %v792
    %v801 = vpack.c.bf16 %v793, %v793
    %v802 = vpack.c.bf16 %v794, %v794
    %v803 = vpack.c.bf16 %v795, %v795
    %v804 = vpack.c.bf16 %v506, %v506
    %v805 = vpack.c.bf16 %v508, %v508
    %v806 = vpack.c.bf16 %v532, %v532
    %v807 = vpack.c.bf16 %v534, %v534
    %v810 = vunpack.c.l.b16 %v796
    %v811 = vunpack.c.l.b16 %v797
    %v812 = vpack.c.b16 %v811, %v810
    %v815 = vunpack.c.l.b16 %v804
    %v816 = vunpack.c.l.b16 %v805
    %v817 = vpack.c.b16 %v816, %v815
    %v820 = vsel %vm707, %v812, 0
    %822 = vmatpush.bf16.msra.mxu0 0
    %823 = vmatpush.bf16.msra.mxu0 0
    %824 = vmatpush.bf16.msra.mxu0 0
    %825 = vmatpush.bf16.msra.mxu0 0
    %826 = vmatpush.bf16.msra.mxu0 0
    %827 = vmatpush.bf16.msra.mxu0 0
    %828 = vmatpush.bf16.msra.mxu0 0
    %829 = vmatpush.bf16.msra.mxu0 %v817
    %830 = vmatmul.bf16.gmra.mxu0 %v820
    %v831 = vpop.f32.mrf.mxu0
    %v832 = vadd.f32 0.0, %v831
    %v833 = vpop.f32.mrf.mxu0
    %v834 = vadd.f32 0.0, %v833
    %835 = vdwg.mxu0
    %v838 = vunpack.c.l.b16 %v798
    %v839 = vunpack.c.l.b16 %v799
    %v840 = vpack.c.b16 %v839, %v838
    %v842 = vsel %vm707, %v840, 0
    %844 = vmatpush.bf16.msra.mxu0 0
    %845 = vmatpush.bf16.msra.mxu0 0
    %846 = vmatpush.bf16.msra.mxu0 0
    %847 = vmatpush.bf16.msra.mxu0 0
    %848 = vmatpush.bf16.msra.mxu0 0
    %849 = vmatpush.bf16.msra.mxu0 0
    %850 = vmatpush.bf16.msra.mxu0 0
    %851 = vmatpush.bf16.msra.mxu0 %v817
    %852 = vmatmul.bf16.gmra.mxu0 %v842
    %v853 = vpop.f32.mrf.mxu0
    %v854 = vadd.f32 0.0, %v853
    %v855 = vpop.f32.mrf.mxu0
    %v856 = vadd.f32 0.0, %v855
    %857 = vdwg.mxu0
    %v860 = vunpack.c.l.b16 %v800
    %v861 = vunpack.c.l.b16 %v801
    %v862 = vpack.c.b16 %v861, %v860
    %v865 = vunpack.c.l.b16 %v806
    %v866 = vunpack.c.l.b16 %v807
    %v867 = vpack.c.b16 %v866, %v865
    %v870 = vsel %vm707, %v862, 0
    %872 = vmatpush.bf16.msra.mxu0 0
    %873 = vmatpush.bf16.msra.mxu0 0
    %874 = vmatpush.bf16.msra.mxu0 0
    %875 = vmatpush.bf16.msra.mxu0 0
    %876 = vmatpush.bf16.msra.mxu0 0
    %877 = vmatpush.bf16.msra.mxu0 0
    %878 = vmatpush.bf16.msra.mxu0 0
    %879 = vmatpush.bf16.msra.mxu0 %v867
    %880 = vmatmul.bf16.gmra.mxu0 %v870
    %v881 = vpop.f32.mrf.mxu0
    %v882 = vadd.f32 0.0, %v881
    %v883 = vpop.f32.mrf.mxu0
    %v884 = vadd.f32 0.0, %v883
    %885 = vdwg.mxu0
    %v888 = vunpack.c.l.b16 %v802
    %v889 = vunpack.c.l.b16 %v803
    %v890 = vpack.c.b16 %v889, %v888
    %v892 = vsel %vm707, %v890, 0
    %894 = vmatpush.bf16.msra.mxu0 0
    %895 = vmatpush.bf16.msra.mxu0 0
    %896 = vmatpush.bf16.msra.mxu0 0
    %897 = vmatpush.bf16.msra.mxu0 0
    %898 = vmatpush.bf16.msra.mxu0 0
    %899 = vmatpush.bf16.msra.mxu0 0
    %900 = vmatpush.bf16.msra.mxu0 0
    %901 = vmatpush.bf16.msra.mxu0 %v867
    %902 = vmatmul.bf16.gmra.mxu0 %v892
    %v903 = vpop.f32.mrf.mxu0
    %v904 = vadd.f32 0.0, %v903
    %v905 = vpop.f32.mrf.mxu0
    %v906 = vadd.f32 0.0, %v905
    %907 = vdwg.mxu0
    %v908 = vpack.c.bf16 %v832, %v832
    %v909 = vpack.c.bf16 %v834, %v834
    %v910 = vpack.c.bf16 %v854, %v854
    %v911 = vpack.c.bf16 %v856, %v856
    %v912 = vpack.c.bf16 %v882, %v882
    %v913 = vpack.c.bf16 %v884, %v884
    %v914 = vpack.c.bf16 %v904, %v904
    %v915 = vpack.c.bf16 %v906, %v906
    %v916 = vld [vmem:[%s6] sm:$0xf]
    %v917 = vld [vmem:[%s6 + $0x4] sm:$0xf]
    %v918 = vld [vmem:[%s6 + $0x8] sm:$0xf]
    %v919 = vld [vmem:[%s6 + $0xc] sm:$0xf]
    %v922 = vunpack.c.l.b16 %v908
    %v923 = vunpack.c.l.b16 %v909
    %v924 = vpack.c.b16 %v923, %v922
    %v926 = vsel %vm594, %v924, 0
    %vm928 = vcmask 1043456
    %v930 = vsel %vm928, %v916, 0
    %932 = vmatpush.bf16.msra.mxu0 0
    %933 = vmatpush.bf16.msra.mxu0 0
    %934 = vmatpush.bf16.msra.mxu0 0
    %935 = vmatpush.bf16.msra.mxu0 0
    %936 = vmatpush.bf16.msra.mxu0 0
    %937 = vmatpush.bf16.msra.mxu0 0
    %938 = vmatpush.bf16.msra.mxu0 0
    %939 = vmatpush.bf16.msra.mxu0 %v930
    %940 = vmatmul.bf16.gmra.mxu0 %v926
    %v941 = vpop.f32.mrf.mxu0
    %v942 = vadd.f32 0.0, %v941
    %v943 = vpop.f32.mrf.mxu0
    %v944 = vadd.f32 0.0, %v943
    %945 = vdwg.mxu0
    %v948 = vunpack.c.l.b16 %v910
    %v949 = vunpack.c.l.b16 %v911
    %v950 = vpack.c.b16 %v949, %v948
    %v952 = vsel %vm594, %v950, 0
    %v955 = vsel %vm928, %v917, 0
    %957 = vmatpush.bf16.msra.mxu0 0
    %958 = vmatpush.bf16.msra.mxu0 0
    %959 = vmatpush.bf16.msra.mxu0 0
    %960 = vmatpush.bf16.msra.mxu0 0
    %961 = vmatpush.bf16.msra.mxu0 0
    %962 = vmatpush.bf16.msra.mxu0 0
    %963 = vmatpush.bf16.msra.mxu0 0
    %964 = vmatpush.bf16.msra.mxu0 %v955
    %965 = vmatmul.bf16.gmra.mxu0 %v952
    %v966 = vpop.f32.mrf.mxu0
    %v967 = vadd.f32 0.0, %v966
    %v968 = vpop.f32.mrf.mxu0
    %v969 = vadd.f32 0.0, %v968
    %970 = vdwg.mxu0
    %v973 = vunpack.c.l.b16 %v912
    %v974 = vunpack.c.l.b16 %v913
    %v975 = vpack.c.b16 %v974, %v973
    %v977 = vsel %vm594, %v975, 0
    %v980 = vsel %vm928, %v918, 0
    %982 = vmatpush.bf16.msra.mxu0 0
    %983 = vmatpush.bf16.msra.mxu0 0
    %984 = vmatpush.bf16.msra.mxu0 0
    %985 = vmatpush.bf16.msra.mxu0 0
    %986 = vmatpush.bf16.msra.mxu0 0
    %987 = vmatpush.bf16.msra.mxu0 0
    %988 = vmatpush.bf16.msra.mxu0 0
    %989 = vmatpush.bf16.msra.mxu0 %v980
    %990 = vmatmul.bf16.gmra.mxu0 %v977
    %v991 = vpop.f32.mrf.mxu0
    %v992 = vadd.f32 0.0, %v991
    %v993 = vpop.f32.mrf.mxu0
    %v994 = vadd.f32 0.0, %v993
    %995 = vdwg.mxu0
    %v998 = vunpack.c.l.b16 %v914
    %v999 = vunpack.c.l.b16 %v915
    %v1000 = vpack.c.b16 %v999, %v998
    %v1002 = vsel %vm594, %v1000, 0
    %v1005 = vsel %vm928, %v919, 0
    %1007 = vmatpush.bf16.msra.mxu0 0
    %1008 = vmatpush.bf16.msra.mxu0 0
    %1009 = vmatpush.bf16.msra.mxu0 0
    %1010 = vmatpush.bf16.msra.mxu0 0
    %1011 = vmatpush.bf16.msra.mxu0 0
    %1012 = vmatpush.bf16.msra.mxu0 0
    %1013 = vmatpush.bf16.msra.mxu0 0
    %1014 = vmatpush.bf16.msra.mxu0 %v1005
    %1015 = vmatmul.bf16.gmra.mxu0 %v1002
    %v1016 = vpop.f32.mrf.mxu0
    %v1017 = vadd.f32 0.0, %v1016
    %v1018 = vpop.f32.mrf.mxu0
    %v1019 = vadd.f32 0.0, %v1018
    %1020 = vdwg.mxu0
    %v1021 = vsel %vm61, %v942, 0.0
    %v1022 = vsel %vm61, %v967, 0.0
    %v1023 = vadd.f32 %v1021, %v1022
    %v1024 = vsel %vm61, %v992, 0.0
    %v1025 = vadd.f32 %v1023, %v1024
    %v1026 = vsel %vm61, %v1017, 0.0
    %v1027 = vadd.f32 %v1025, %v1026
    %v1028 = vsel %vm61, %v944, 0.0
    %v1029 = vsel %vm61, %v969, 0.0
    %v1030 = vadd.f32 %v1028, %v1029
    %v1031 = vsel %vm61, %v994, 0.0
    %v1032 = vadd.f32 %v1030, %v1031
    %v1033 = vsel %vm61, %v1019, 0.0
    %v1034 = vadd.f32 %v1032, %v1033
    %v1035 = vadd.f32 %v52, %v1027
    %v1036 = vadd.f32 %v53, %v1034
    %v1037 = vld [vmem:[%s11] sm:$0x1]
    %v1038 = vmul.f32 %v1035, %v1035
    %v1039 = vmul.f32 %v1036, %v1036
    %v1040 = vsel %vm61, %v1038, 0.0
    %1041 = vadd.xlane.f32.xlu0 %v1040
    %v1042 = vpop.xlane.xlu0 %1041
    %v1043 = vsel %vm61, %v1039, 0.0
    %1044 = vadd.xlane.f32.xlu0 %v1043
    %v1045 = vpop.xlane.xlu0 %1044
    %v1046 = vmul.f32 %v1042, %v74
    %v1047 = vmul.f32 %v1045, %v74
    %v1048 = vadd.f32 %v1046, 1e-05
    %v1049 = vadd.f32 %v1047, 1e-05
    %v1050 = vrsqrt.pop %v1048
    %v1051 = vmul.f32 %v1050, %v1048
    %v1052 = vmul.f32 %v1051, %v1050
    %v1053 = vmul.f32 0.5, %v1052
    %v1054 = vsub.f32 1.5, %v1053
    %v1055 = vmul.f32 %v1050, %v1054
    %vm1056 = vweird.f32 %v1048
    %vm1057 = vweird.f32 %v1050
    %vm1058 = vmor %vm1056, %vm1057
    %v1059 = vsel %vm1058, %v1050, %v1055
    %v1060 = vrsqrt.pop %v1049
    %v1061 = vmul.f32 %v1060, %v1049
    %v1062 = vmul.f32 %v1061, %v1060
    %v1063 = vmul.f32 0.5, %v1062
    %v1064 = vsub.f32 1.5, %v1063
    %v1065 = vmul.f32 %v1060, %v1064
    %vm1066 = vweird.f32 %v1049
    %vm1067 = vweird.f32 %v1060
    %vm1068 = vmor %vm1066, %vm1067
    %v1069 = vsel %vm1068, %v1060, %v1065
    %v1070 = vmul.f32 %v1035, %v1059
    %v1071 = vmul.f32 %v1036, %v1069
    %v1073 = vperm.slane %v1037, 0
    %v1075 = vmul.f32 %v1070, %v1073
    %v1076 = vmul.f32 %v1071, %v1073
    %v1077 = vpack.c.bf16 %v1076, %v1075
    %v1078 = vld [vmem:[%s7] sm:$0xf]
    %v1079 = vld [vmem:[%s7 + $0x4] sm:$0xf]
    %v1080 = vld [vmem:[%s7 + $0x8] sm:$0xf]
    %v1081 = vld [vmem:[%s7 + $0xc] sm:$0xf]
    %v1086 = vunpack.c.l.b16 %v1078
    %v1087 = vunpack.c.l.b16 %v1079
    %v1088 = vunpack.c.l.b16 %v1080
    %v1089 = vunpack.c.l.b16 %v1081
    %v1090 = vpack.c.b16 %v1087, %v1086
    %v1091 = vpack.c.b16 %v1089, %v1088
    %v1095 = vsel %vm61, %v1077, 0
    %1097 = vmatpush.bf16.msra.mxu0 0
    %1098 = vmatpush.bf16.msra.mxu0 0
    %1099 = vmatpush.bf16.msra.mxu0 0
    %1100 = vmatpush.bf16.msra.mxu0 0
    %1101 = vmatpush.bf16.msra.mxu0 0
    %1102 = vmatpush.bf16.msra.mxu0 0
    %1103 = vmatpush.bf16.msra.mxu0 %v1091
    %1104 = vmatpush.bf16.msra.mxu0 %v1090
    %1105 = vmatmul.bf16.gmra.mxu0 %v1095
    %v1106 = vpop.f32.mrf.mxu0
    %v1107 = vadd.f32 0.0, %v1106
    %v1108 = vpop.f32.mrf.mxu0
    %v1109 = vadd.f32 0.0, %v1108
    %1110 = vdwg.mxu0
    %v1111 = vld [vmem:[%s8] sm:$0xf]
    %v1112 = vld [vmem:[%s8 + $0x4] sm:$0xf]
    %v1113 = vld [vmem:[%s8 + $0x8] sm:$0xf]
    %v1114 = vld [vmem:[%s8 + $0xc] sm:$0xf]
    %v1119 = vunpack.c.l.b16 %v1111
    %v1120 = vunpack.c.l.b16 %v1112
    %v1121 = vunpack.c.l.b16 %v1113
    %v1122 = vunpack.c.l.b16 %v1114
    %v1123 = vpack.c.b16 %v1120, %v1119
    %v1124 = vpack.c.b16 %v1122, %v1121
    %1127 = vmatpush.bf16.msra.mxu0 0
    %1128 = vmatpush.bf16.msra.mxu0 0
    %1129 = vmatpush.bf16.msra.mxu0 0
    %1130 = vmatpush.bf16.msra.mxu0 0
    %1131 = vmatpush.bf16.msra.mxu0 0
    %1132 = vmatpush.bf16.msra.mxu0 0
    %1133 = vmatpush.bf16.msra.mxu0 %v1124
    %1134 = vmatpush.bf16.msra.mxu0 %v1123
    %1135 = vmatmul.bf16.gmra.mxu0 %v1095
    %v1136 = vpop.f32.mrf.mxu0
    %v1137 = vadd.f32 0.0, %v1136
    %v1138 = vpop.f32.mrf.mxu0
    %v1139 = vadd.f32 0.0, %v1138
    %1140 = vdwg.mxu0
    %v1141 = vsub.f32 0.0, %v1107
    %v1142 = vsub.f32 0.0, %v1109
    %v1143 = vmul.f32 %v1141, 1.442695
    %v1144 = vpow.pop %v1143
    %v1145 = vmul.f32 %v1142, 1.442695
    %v1146 = vpow.pop %v1145
    %v1147 = vadd.f32 %v1144, 1.0
    %v1148 = vadd.f32 %v1146, 1.0
    %v1149 = vrcp.pop %v1147
    %v1150 = vrcp.pop %v1148
    %v1151 = vmul.f32 %v1107, %v1149
    %v1152 = vmul.f32 %v1109, %v1150
    %v1153 = vmul.f32 %v1151, %v1137
    %v1154 = vmul.f32 %v1152, %v1139
    %v1155 = vpack.c.bf16 %v1154, %v1153
    %v1156 = vld [vmem:[%s9] sm:$0xf]
    %v1157 = vld [vmem:[%s9 + $0x4] sm:$0xf]
    %v1158 = vld [vmem:[%s9 + $0x8] sm:$0xf]
    %v1159 = vld [vmem:[%s9 + $0xc] sm:$0xf]
    %v1160 = vld [vmem:[%s9 + $0x10] sm:$0xf]
    %v1161 = vld [vmem:[%s9 + $0x14] sm:$0xf]
    %v1162 = vld [vmem:[%s9 + $0x18] sm:$0xf]
    %v1163 = vld [vmem:[%s9 + $0x1c] sm:$0xf]
    %v1172 = vunpack.c.l.b16 %v1156
    %v1173 = vunpack.c.l.b16 %v1157
    %v1174 = vunpack.c.l.b16 %v1158
    %v1175 = vunpack.c.l.b16 %v1159
    %v1176 = vunpack.c.l.b16 %v1160
    %v1177 = vunpack.c.l.b16 %v1161
    %v1178 = vunpack.c.l.b16 %v1162
    %v1179 = vunpack.c.l.b16 %v1163
    %v1180 = vpack.c.b16 %v1173, %v1172
    %v1181 = vpack.c.b16 %v1175, %v1174
    %v1182 = vpack.c.b16 %v1177, %v1176
    %v1183 = vpack.c.b16 %v1179, %v1178
    %vm1188 = vcmask 523264
    %v1190 = vsel %vm1188, %v1155, 0
    %1192 = vmatpush.bf16.msra.mxu0 0
    %1193 = vmatpush.bf16.msra.mxu0 0
    %1194 = vmatpush.bf16.msra.mxu0 0
    %1195 = vmatpush.bf16.msra.mxu0 0
    %1196 = vmatpush.bf16.msra.mxu0 %v1183
    %1197 = vmatpush.bf16.msra.mxu0 %v1182
    %1198 = vmatpush.bf16.msra.mxu0 %v1181
    %1199 = vmatpush.bf16.msra.mxu0 %v1180
    %1200 = vmatmul.bf16.gmra.mxu0 %v1190
    %v1201 = vpop.f32.mrf.mxu0
    %v1202 = vadd.f32 0.0, %v1201
    %v1203 = vpop.f32.mrf.mxu0
    %v1204 = vadd.f32 0.0, %v1203
    %1205 = vdwg.mxu0
    %v1206 = vadd.f32 %v1035, %v1202
    %v1207 = vadd.f32 %v1036, %v1204
    %1208 = vst.msk [vmem:[#allocation2] sm:$0xff] %vm61, %v1206
    %1209 = vst.msk [vmem:[#allocation2 + $0x8] sm:$0xff] %vm61, %v1207
    // Predicated region
    $region62: #{tpu_custom_call.1} parent=1 // pred_check
      _
    $region63: #{tpu_custom_call.1} parent=1 // pred_check_branch
      %1211 = sbr.rel (0) target = $region65
    $region64: #{tpu_custom_call.1} parent=1 // pred_region
      %1213 = vsyncadd [#allocation3], 0
      %s1214 = sshll.u32 [#allocation2], 4
      %s1215 = int_to_ptr.vmem [resolvable:$true] %s1214
      %s1216 = sshll.u32 %s15, 4
      %s1217 = int_to_ptr.hbm [resolvable:$true] %s1216
      %1222 = dma.vmem_to_hbm [thread:$0]  %s1215, 256, %s1217, [#allocation3], 128, 128, 8
    $region65: #{tpu_custom_call.1} parent=1 // pred_fallthru
      _
    // Predicated region
    $region66: #{tpu_custom_call.1} parent=1 // pred_check
      _
    $region67: #{tpu_custom_call.1} parent=1 // pred_check_branch
      %1224 = sbr.rel (0) target = $region69
    $region68: #{tpu_custom_call.1} parent=1 // pred_region
      %1226 = dma.done [#allocation3], 256
    $region69: #{tpu_custom_call.1} parent=1 // pred_fallthru
      _
    %1227 = vsyncpa [#allocation3], 1

</llo_original>
